<compile_context>
chip_gen: v7x
topology: tpu7x:2x2x1
jax: 0.10.0
libtpu: 0.0.40
codegen_flags: <defaults>
</compile_context>

<pallas_src>
import jax
import jax.numpy as jnp
from jax.experimental import pallas as pl
from jax.experimental.pallas import tpu as pltpu


def _mul2_add1_kernel(x_ref, o_ref):
    # Elementwise on the whole VMEM tile: out = x * 2 + 1
    o_ref[...] = x_ref[...] * 2 + 1


def _pick_lane_width(total: int) -> int:
    """Widest lane-dense column count (multiple of 128) that divides `total`.

    Returns 0 if `total` is not a multiple of 128 (caller must pad)."""
    for c in (4096, 2048, 1024, 512, 256, 128):
        if total % c == 0:
            return c
    return 0


def mul2_add1(x: jax.Array) -> jax.Array:
    """Computes x * 2 + 1 with a Pallas TPU kernel, preserving shape/dtype."""
    orig_shape = x.shape
    dtype = x.dtype
    total = x.size
    itemsize = jnp.dtype(dtype).itemsize

    x_flat = x.reshape(-1)

    c = _pick_lane_width(total)
    padded_total = total
    if c == 0:
        # Ragged tail: pad the flat length up to a multiple of 128 (only path
        # that incurs an extra pad + slice; avoided whenever total % 128 == 0).
        c = 128
        padded_total = pl.cdiv(total, c) * c
        x_flat = jnp.pad(x_flat, (0, padded_total - total))

    rows = padded_total // c
    x2d = x_flat.reshape(rows, c)

    if padded_total * itemsize <= (1 << 20):
        # ---- small-input fast path: whole array as a single VMEM block ----
        out2d = pl.pallas_call(
            _mul2_add1_kernel,
            out_shape=jax.ShapeDtypeStruct((rows, c), dtype),
            in_specs=[pl.BlockSpec(memory_space=pltpu.MemorySpace.VMEM)],
            out_specs=pl.BlockSpec(memory_space=pltpu.MemorySpace.VMEM),
        )(x2d)
    else:
        # ---- streaming path: multi-MiB, lane-dense tiles over a 1-D grid ----
        target_tile_bytes = 2 * 1024 * 1024  # ~2 MiB per tile
        tm = target_tile_bytes // (c * itemsize)
        tm = max(8, (tm // 8) * 8)
        # Keep at least 2 grid steps when there is enough work so the parallel
        # axis can be sharded across v7x's two TensorCores.
        if rows > 8 and tm >= rows:
            tm = max(8, (((rows + 1) // 2) + 7) // 8 * 8)
        tm = min(tm, rows)
        grid = (pl.cdiv(rows, tm),)

        out2d = pl.pallas_call(
            _mul2_add1_kernel,
            out_shape=jax.ShapeDtypeStruct((rows, c), dtype),
            grid_spec=pltpu.PrefetchScalarGridSpec(
                num_scalar_prefetch=0,
                grid=grid,
                in_specs=[pl.BlockSpec((tm, c), lambda i: (i, 0))],
                out_specs=pl.BlockSpec((tm, c), lambda i: (i, 0)),
            ),
            compiler_params=pltpu.CompilerParams(
                dimension_semantics=("parallel",),
            ),
        )(x2d)

    out_flat = out2d.reshape(-1)
    if padded_total != total:
        out_flat = out_flat[:total]
    return out_flat.reshape(orig_shape)


if __name__ == "__main__":
    key = jax.random.PRNGKey(0)

    # 1) Canonical small NCHW input consistent with the module's forward
    #    (exercises the single-block fast path).
    x_small = jax.random.normal(key, (2, 4, 16, 16), dtype=jnp.float32)
    out_small = jax.block_until_ready(mul2_add1(x_small))
    ref_small = x_small * 2 + 1
    assert out_small.shape == x_small.shape and out_small.dtype == x_small.dtype
    assert jnp.allclose(out_small, ref_small, atol=1e-6), "small-path mismatch"

    # 2) Medium input (exercises the tiled, multi-step streaming path).
    k2, k3 = jax.random.split(key)
    x_med = jax.random.normal(k2, (4, 8, 128, 128), dtype=jnp.float32)
    out_med = jax.block_until_ready(mul2_add1(x_med))
    assert jnp.allclose(out_med, x_med * 2 + 1, atol=1e-6), "stream-path mismatch"

    # 3) Ragged-total input (exercises the pad + slice fallback).
    x_rag = jax.random.normal(k3, (3, 5, 7), dtype=jnp.float32)
    out_rag = jax.block_until_ready(mul2_add1(x_rag))
    assert jnp.allclose(out_rag, x_rag * 2 + 1, atol=1e-6), "ragged-path mismatch"

    print("KERNEL_OK")
</pallas_src>

<mosaic_0001>
module attributes {stable_mosaic.version = 11 : i64} {
  func.func @_mul2_add1_kernel(%arg0: memref<1x2048xf32, #tpu.memory_space<vmem>>, %arg1: memref<1x2048xf32, #tpu.memory_space<vmem>>) attributes {dimension_semantics = [], scalar_prefetch = 0 : i64, scratch_operands = 0 : i64, tpu.core_type = #tpu.core_type<tc>} {
    %c0 = arith.constant 0 : index
    %c0_0 = arith.constant 0 : index
    %0 = vector.load %arg0[%c0, %c0_0] : memref<1x2048xf32, #tpu.memory_space<vmem>>, vector<1x2048xf32>
    %cst = arith.constant 2.000000e+00 : f32
    %1 = vector.broadcast %cst : f32 to vector<1x2048xf32>
    %2 = arith.mulf %0, %1 : vector<1x2048xf32>
    %cst_1 = arith.constant 1.000000e+00 : f32
    %3 = vector.broadcast %cst_1 : f32 to vector<1x2048xf32>
    %4 = arith.addf %2, %3 : vector<1x2048xf32>
    %c0_2 = arith.constant 0 : index
    %c0_3 = arith.constant 0 : index
    %5 = vector.load %arg1[%c0_2, %c0_3] : memref<1x2048xf32, #tpu.memory_space<vmem>>, vector<1x2048xf32>
    tpu.vector_store %arg1[%c0_2, %c0_3], %4 {strides = array<i32>} : memref<1x2048xf32, #tpu.memory_space<vmem>>, vector<1x2048xf32>,
    return
  }
}

</mosaic_0001>

<llo_original>
// kernel: tpu_custom_call.1
$region0: #{tpu_custom_call.1}
  #allocation0 [shape = 'u32[]', space=smem, size = 0x4, offset = 0x4, fixed_abs, tag = 'smem constant byte address 0x4 - core index']
  #allocation1 [shape = 'u32[144,128]{1,0:T(1,128)}', space=vmem, size = 0x12000, scoped, tag = 'internal scratch']
  %s0 = inlined_call_operand.hbm [shape: f32[1,2048], index: 0, kind: input, shape index: {}]
  %s1 = inlined_call_operand.hbm [shape: f32[1,2048], index: 1, kind: output, shape index: {}]
  %s2 = sld [smem:[#allocation0]]
  $region18: #{tpu_custom_call.1} parent=0
    _
  %s4 = ssub.s32 1, %s2
  %s5 = scalar_select 0, %s4, %s2
  $region1: #{tpu_custom_call.1} parent=0
    #allocation2 [shape = 'u8[8192]{0}', space=vmem, size = 0x2000, scoped, tag = 'input window, operand 0, single buffered']
    #allocation3 [shape = 's32[1]{0}', space=sflag, size = 0x4, scoped, tag = 'scoped memory for tpu_custom_call.1']
    #allocation4 [shape = 's32[1]{0}', space=sflag, size = 0x4, scoped, tag = 'scoped memory for tpu_custom_call.1']
    #allocation5 [shape = 'u8[8192]{0}', space=vmem, size = 0x2000, scoped, tag = 'output window, operand 0, single buffered']
    %6 = vsyncpa [#allocation3], 0
    %7 = vsyncpa [#allocation4], 0
    // Predicated region
    $region2: #{tpu_custom_call.1} parent=1 // pred_check
      _
    $region3: #{tpu_custom_call.1} parent=1 // pred_check_branch
      %9 = sbr.rel (0) target = $region5
    $region4: #{tpu_custom_call.1} parent=1 // pred_region
      %s11 = ssub.s32 256, 256
      %12 = vsyncadd [#allocation3], %s11
      %s14 = sshll.u32 [#allocation2], 4
      %s15 = int_to_ptr.vmem [resolvable:$true] %s14
      %17 = dma.hbm_to_vmem [thread:$0]  %s0, 256, %s15, [#allocation3]
    $region5: #{tpu_custom_call.1} parent=1 // pred_fallthru
      _
    // Predicated region
    $region6: #{tpu_custom_call.1} parent=1 // pred_check
      _
    $region7: #{tpu_custom_call.1} parent=1 // pred_check_branch
      %19 = sbr.rel (0) target = $region9
    $region8: #{tpu_custom_call.1} parent=1 // pred_region
      %20 = dma.done [#allocation3], 256
    $region9: #{tpu_custom_call.1} parent=1 // pred_fallthru
      _
    %v21 = vld [vmem:[#allocation2] sm:$0xff]
    %v22 = vld [vmem:[#allocation2 + $0x8] sm:$0xff]
    %v23 = vmul.f32 %v21, 2.0
    %v24 = vmul.f32 %v22, 2.0
    %v25 = vadd.f32 %v23, 1.0
    %v26 = vadd.f32 %v24, 1.0
    %27 = vst [vmem:[#allocation5] sm:$0xff] %v25
    %28 = vst [vmem:[#allocation5 + $0x8] sm:$0xff] %v26
    // Predicated region
    $region10: #{tpu_custom_call.1} parent=1 // pred_check
      _
    $region11: #{tpu_custom_call.1} parent=1 // pred_check_branch
      %30 = sbr.rel (0) target = $region13
    $region12: #{tpu_custom_call.1} parent=1 // pred_region
      %s32 = ssub.s32 256, 256
      %33 = vsyncadd [#allocation4], %s32
      %s35 = sshll.u32 [#allocation5], 4
      %s36 = int_to_ptr.vmem [resolvable:$true] %s35
      %38 = dma.vmem_to_hbm [thread:$0]  %s36, 256, %s1, [#allocation4]
    $region13: #{tpu_custom_call.1} parent=1 // pred_fallthru
      _
    // Predicated region
    $region14: #{tpu_custom_call.1} parent=1 // pred_check
      _
    $region15: #{tpu_custom_call.1} parent=1 // pred_check_branch
      %40 = sbr.rel (0) target = $region17
    $region16: #{tpu_custom_call.1} parent=1 // pred_region
      %41 = dma.done [#allocation4], 256
    $region17: #{tpu_custom_call.1} parent=1 // pred_fallthru
      _
    %42 = vsyncpa [#allocation3], 1
    %43 = vsyncpa [#allocation4], 1

</llo_original>
